<compile_context>
chip_gen: v6e
topology: v6e:2x2x1
jax: 0.10.0
libtpu: 0.0.40
codegen_flags: <defaults>
</compile_context>

<pallas_src>
import jax
import jax.numpy as jnp
from jax.experimental import pallas as pl
from jax.experimental.pallas import tpu as pltpu


# ---------------------------------------------------------------------------
# Pass 1: pooled sum / max over the H*W axis, tiled along H*W.
#   x block     : (C, D, THW)   (leading batch dim squeezed via `None`)
#   sum/max out : (C, D)        (block index constant over the hw-tile axis ->
#                                VMEM-resident accumulator)
# ---------------------------------------------------------------------------
def _cla_reduce_kernel(x_ref, sum_ref, max_ref):
    t = pl.program_id(1)
    xv = x_ref[...]                       # (C, D, THW) float32
    tile_sum = jnp.sum(xv, axis=2)        # (C, D)  lane reduction
    tile_max = jnp.max(xv, axis=2)        # (C, D)

    @pl.when(t == 0)
    def _():
        sum_ref[...] = tile_sum
        max_ref[...] = tile_max

    @pl.when(t != 0)
    def _():
        sum_ref[...] = sum_ref[...] + tile_sum
        max_ref[...] = jnp.maximum(max_ref[...], tile_max)


# ---------------------------------------------------------------------------
# Pass 2: fused elementwise apply:  out = x * scale[b, c, d]
# ---------------------------------------------------------------------------
def _cla_apply_kernel(x_ref, scale_ref, o_ref):
    # x_ref: (C, D, THW), scale_ref: (C, D)
    o_ref[...] = x_ref[...] * scale_ref[...][:, :, None]


def _choose_hw_tile(HW, C, D, max_block_bytes=4 * 1024 * 1024):
    """Largest lane-dense (multiple-of-128) tile that divides HW and keeps the
    per-step (C, D, THW) f32 block under `max_block_bytes`.  Falls back to the
    full HW extent (allowed by the tiling rule) when HW % 128 != 0."""
    if HW % 128 != 0:
        return HW                          # full-extent block; may use masked stores
    max_elems = max(max_block_bytes // (4 * C * D), 128)
    best = 128
    t = 128
    while t <= HW:
        if HW % t == 0 and t <= max_elems:
            best = t
        t += 128
    return best


def channel_layer_attention(x, w1_c, w2_c, w1_d, w2_d):
    """x: (B, C, D, H, W) float32.  Linear weights in PyTorch (out, in) layout."""
    B, C, D, H, W = x.shape
    HW = H * W
    x4 = x.reshape(B, C, D, HW)

    thw = _choose_hw_tile(HW, C, D)
    num_t = HW // thw
    vmem_limit = 48 * 1024 * 1024          # explicit; leaves headroom on v7x (64 MiB)

    # -------- Pass 1: pooled stats (sum over HW, max over HW) per (b, c, d) ----
    sum_d, max_d = pl.pallas_call(
        _cla_reduce_kernel,
        out_shape=(jax.ShapeDtypeStruct((B, C, D), jnp.float32),
                   jax.ShapeDtypeStruct((B, C, D), jnp.float32)),
        grid_spec=pltpu.PrefetchScalarGridSpec(
            num_scalar_prefetch=0,
            grid=(B, num_t),
            in_specs=[
                pl.BlockSpec((None, C, D, thw), lambda b, t: (b, 0, 0, t)),
            ],
            out_specs=(
                pl.BlockSpec((None, C, D), lambda b, t: (b, 0, 0)),
                pl.BlockSpec((None, C, D), lambda b, t: (b, 0, 0)),
            ),
        ),
        compiler_params=pltpu.CompilerParams(
            dimension_semantics=("parallel", "arbitrary"),
            vmem_limit_bytes=vmem_limit),
    )(x4)

    # -------- Tiny SE-MLPs, batched over B (negligible FLOPs, done in JAX) ----
    avg_d = sum_d * (1.0 / HW)                         # (B, C, D)
    avg_c = jnp.sum(sum_d, axis=2) * (1.0 / (D * HW))  # (B, C)
    max_c = jnp.max(max_d, axis=2)                     # (B, C)

    def fc_c(v):                                       # (B, C) -> (B, C)
        return jnp.maximum(v @ w1_c.T, 0.0) @ w2_c.T

    def fc_d(v):                                       # (..., D) -> (..., D)
        return jnp.maximum(v @ w1_d.T, 0.0) @ w2_d.T

    ca = jax.nn.sigmoid(fc_c(avg_c) + fc_c(max_c))     # (B, C)
    g = 1.0 + ca                                       # channel gate, > 0
    # pools of x1 = g*x are g * pools(x)   (valid because g > 0)
    la = jax.nn.sigmoid(fc_d(g[:, :, None] * avg_d) + fc_d(g[:, :, None] * max_d))
    scale = (g[:, :, None] * (1.0 + la) + 1.0).astype(x.dtype)   # (B, C, D)

    # -------- Pass 2: fused elementwise apply  out = x * scale ----------------
    # TODO(synk): for HBM-bound deployments, stream x/out as bf16 here (keep the
    # pooled stats and FCs in f32) to halve bandwidth.
    out = pl.pallas_call(
        _cla_apply_kernel,
        out_shape=jax.ShapeDtypeStruct((B, C, D, HW), x.dtype),
        grid_spec=pltpu.PrefetchScalarGridSpec(
            num_scalar_prefetch=0,
            grid=(B, num_t),
            in_specs=[
                pl.BlockSpec((None, C, D, thw), lambda b, t: (b, 0, 0, t)),
                pl.BlockSpec((None, C, D), lambda b, t: (b, 0, 0)),
            ],
            out_specs=pl.BlockSpec((None, C, D, thw), lambda b, t: (b, 0, 0, t)),
        ),
        compiler_params=pltpu.CompilerParams(
            dimension_semantics=("parallel", "parallel"),
            vmem_limit_bytes=vmem_limit),
    )(x4, scale)

    return out.reshape(B, C, D, H, W)


def reference(x, w1_c, w2_c, w1_d, w2_d):
    """Pure-JAX reproduction of the PyTorch forward (for verification)."""
    avg_c = x.mean(axis=(2, 3, 4))
    max_c = x.max(axis=(2, 3, 4))

    def fc_c(v):
        return jnp.maximum(v @ w1_c.T, 0.0) @ w2_c.T

    ca = jax.nn.sigmoid(fc_c(avg_c) + fc_c(max_c))[:, :, None, None, None]
    x1 = x * ca + x

    avg_d = x1.mean(axis=(3, 4))
    max_d = x1.max(axis=(3, 4))

    def fc_d(v):
        return jnp.maximum(v @ w1_d.T, 0.0) @ w2_d.T

    la = jax.nn.sigmoid(fc_d(avg_d) + fc_d(max_d))[:, :, :, None, None]
    x2 = x1 * la + x1
    return x2 + x


if __name__ == "__main__":
    # Module config: in_channels=C, in_depth=D, reduction_ratio=1
    B, C, D, H, W = 2, 4, 8, 16, 16
    rr = 1
    Cr = max(C // rr, 1)
    Dr = max(D // rr, 1)

    key = jax.random.PRNGKey(0)
    kx, k1, k2, k3, k4 = jax.random.split(key, 5)

    x = jax.random.normal(kx, (B, C, D, H, W), dtype=jnp.float32)

    # Deterministic Linear weights (PyTorch-style kaiming-uniform bounds, (out, in))
    def init_linear(k, out_f, in_f):
        bound = 1.0 / (in_f ** 0.5)
        return jax.random.uniform(k, (out_f, in_f), jnp.float32, -bound, bound)

    w1_c = init_linear(k1, Cr, C)   # fc_c layer 1
    w2_c = init_linear(k2, C, Cr)   # fc_c layer 2
    w1_d = init_linear(k3, Dr, D)   # fc_d layer 1
    w2_d = init_linear(k4, D, Dr)   # fc_d layer 2

    out = channel_layer_attention(x, w1_c, w2_c, w1_d, w2_d)
    out = jax.block_until_ready(out)

    ref = reference(x, w1_c, w2_c, w1_d, w2_d)
    assert out.shape == (B, C, D, H, W)
    assert jnp.allclose(out, ref, rtol=1e-4, atol=2e-5), (
        f"max abs diff {jnp.max(jnp.abs(out - ref))}")

    print("KERNEL_OK")
</pallas_src>

<mosaic_0001>
module attributes {stable_mosaic.version = 11 : i64} {
  func.func @_cla_reduce_kernel(%arg0: i32, %arg1: i32, %arg2: memref<1x4x8x256xf32, #tpu.memory_space<vmem>>, %arg3: memref<1x4x8xf32, #tpu.memory_space<vmem>>, %arg4: memref<1x4x8xf32, #tpu.memory_space<vmem>>) attributes {dimension_semantics = [#tpu.dimension_semantics<parallel>, #tpu.dimension_semantics<arbitrary>], iteration_bounds = array<i64: 2, 1>, scalar_prefetch = 0 : i64, scratch_operands = 0 : i64, tpu.core_type = #tpu.core_type<tc>, window_params = [{transform_indices = @transform_0, window_bounds = array<i64: 1, 4, 8, 256>}, {transform_indices = @transform_1, window_bounds = array<i64: 1, 4, 8>}, {transform_indices = @transform_2, window_bounds = array<i64: 1, 4, 8>}]} {
    %c0 = arith.constant 0 : index
    %c0_0 = arith.constant 0 : index
    %c0_1 = arith.constant 0 : index
    %c0_2 = arith.constant 0 : index
    %0 = vector.load %arg2[%c0, %c0_0, %c0_1, %c0_2] : memref<1x4x8x256xf32, #tpu.memory_space<vmem>>, vector<1x4x8x256xf32>
    %1 = vector.shape_cast %0 : vector<1x4x8x256xf32> to vector<4x8x256xf32>
    %cst = arith.constant dense<0.000000e+00> : vector<4x8xf32>
    %2 = vector.multi_reduction <add>, %1, %cst [2] : vector<4x8x256xf32> to vector<4x8xf32>
    %cst_3 = arith.constant dense<0xFF800000> : vector<4x8xf32>
    %3 = vector.multi_reduction <maximumf>, %1, %cst_3 [2] : vector<4x8x256xf32> to vector<4x8xf32>
    %c0_i32 = arith.constant 0 : i32
    %4 = arith.cmpi eq, %arg1, %c0_i32 : i32
    %5 = arith.extui %4 : i1 to i32
    %c0_i32_4 = arith.constant 0 : i32
    %6 = arith.cmpi ne, %5, %c0_i32_4 : i32
    scf.if %6 {
      %c0_7 = arith.constant 0 : index
      %c0_8 = arith.constant 0 : index
      %c0_9 = arith.constant 0 : index
      %10 = vector.load %arg3[%c0_7, %c0_8, %c0_9] : memref<1x4x8xf32, #tpu.memory_space<vmem>>, vector<1x4x8xf32>
      %11 = vector.shape_cast %10 : vector<1x4x8xf32> to vector<4x8xf32>
      %12 = vector.shape_cast %2 : vector<4x8xf32> to vector<1x4x8xf32>
      tpu.vector_store %arg3[%c0_7, %c0_8, %c0_9], %12 {strides = array<i32>} : memref<1x4x8xf32, #tpu.memory_space<vmem>>, vector<1x4x8xf32>,
      %c0_10 = arith.constant 0 : index
      %c0_11 = arith.constant 0 : index
      %c0_12 = arith.constant 0 : index
      %13 = vector.load %arg4[%c0_10, %c0_11, %c0_12] : memref<1x4x8xf32, #tpu.memory_space<vmem>>, vector<1x4x8xf32>
      %14 = vector.shape_cast %13 : vector<1x4x8xf32> to vector<4x8xf32>
      %15 = vector.shape_cast %3 : vector<4x8xf32> to vector<1x4x8xf32>
      tpu.vector_store %arg4[%c0_10, %c0_11, %c0_12], %15 {strides = array<i32>} : memref<1x4x8xf32, #tpu.memory_space<vmem>>, vector<1x4x8xf32>,
    } else {
    }
    %c0_i32_5 = arith.constant 0 : i32
    %7 = arith.cmpi ne, %arg1, %c0_i32_5 : i32
    %8 = arith.extui %7 : i1 to i32
    %c0_i32_6 = arith.constant 0 : i32
    %9 = arith.cmpi ne, %8, %c0_i32_6 : i32
    scf.if %9 {
      %c0_7 = arith.constant 0 : index
      %c0_8 = arith.constant 0 : index
      %c0_9 = arith.constant 0 : index
      %10 = vector.load %arg3[%c0_7, %c0_8, %c0_9] : memref<1x4x8xf32, #tpu.memory_space<vmem>>, vector<1x4x8xf32>
      %11 = vector.shape_cast %10 : vector<1x4x8xf32> to vector<4x8xf32>
      %12 = arith.addf %11, %2 : vector<4x8xf32>
      %c0_10 = arith.constant 0 : index
      %c0_11 = arith.constant 0 : index
      %c0_12 = arith.constant 0 : index
      %13 = vector.load %arg3[%c0_10, %c0_11, %c0_12] : memref<1x4x8xf32, #tpu.memory_space<vmem>>, vector<1x4x8xf32>
      %14 = vector.shape_cast %13 : vector<1x4x8xf32> to vector<4x8xf32>
      %15 = vector.shape_cast %12 : vector<4x8xf32> to vector<1x4x8xf32>
      tpu.vector_store %arg3[%c0_10, %c0_11, %c0_12], %15 {strides = array<i32>} : memref<1x4x8xf32, #tpu.memory_space<vmem>>, vector<1x4x8xf32>,
      %c0_13 = arith.constant 0 : index
      %c0_14 = arith.constant 0 : index
      %c0_15 = arith.constant 0 : index
      %16 = vector.load %arg4[%c0_13, %c0_14, %c0_15] : memref<1x4x8xf32, #tpu.memory_space<vmem>>, vector<1x4x8xf32>
      %17 = vector.shape_cast %16 : vector<1x4x8xf32> to vector<4x8xf32>
      %18 = arith.maximumf %17, %3 : vector<4x8xf32>
      %c0_16 = arith.constant 0 : index
      %c0_17 = arith.constant 0 : index
      %c0_18 = arith.constant 0 : index
      %19 = vector.load %arg4[%c0_16, %c0_17, %c0_18] : memref<1x4x8xf32, #tpu.memory_space<vmem>>, vector<1x4x8xf32>
      %20 = vector.shape_cast %19 : vector<1x4x8xf32> to vector<4x8xf32>
      %21 = vector.shape_cast %18 : vector<4x8xf32> to vector<1x4x8xf32>
      tpu.vector_store %arg4[%c0_16, %c0_17, %c0_18], %21 {strides = array<i32>} : memref<1x4x8xf32, #tpu.memory_space<vmem>>, vector<1x4x8xf32>,
    } else {
    }
    return
  }
  func.func @transform_0(%arg0: i32, %arg1: i32) -> (i32, i32, i32, i32) {
    %c0_i32 = arith.constant 0 : i32
    %c0_i32_0 = arith.constant 0 : i32
    %c0_i32_1 = arith.constant 0 : i32
    return %arg0, %c0_i32, %c0_i32_0, %arg1 : i32, i32, i32, i32
  }
  func.func @transform_1(%arg0: i32, %arg1: i32) -> (i32, i32, i32) {
    %c0_i32 = arith.constant 0 : i32
    %c0_i32_0 = arith.constant 0 : i32
    %c0_i32_1 = arith.constant 0 : i32
    return %arg0, %c0_i32, %c0_i32_0 : i32, i32, i32
  }
  func.func @transform_2(%arg0: i32, %arg1: i32) -> (i32, i32, i32) {
    %c0_i32 = arith.constant 0 : i32
    %c0_i32_0 = arith.constant 0 : i32
    %c0_i32_1 = arith.constant 0 : i32
    return %arg0, %c0_i32, %c0_i32_0 : i32, i32, i32
  }
}

</mosaic_0001>

<llo_original>
// kernel: tpu_custom_call.1
$region0: #{tpu_custom_call.1}
  #allocation0 [shape = 'u32[]', space=smem, size = 0x4, offset = 0x4, fixed_abs, tag = 'smem constant byte address 0x4 - core index']
  #allocation1 [shape = 'u32[144,128]{1,0:T(1,128)}', space=vmem, size = 0x12000, scoped, tag = 'internal scratch']
  %s0 = inlined_call_operand.hbm [shape: f32[2,4,8,256], index: 0, kind: input, shape index: {}]
  %s1 = inlined_call_operand.hbm [shape: f32[2,4,8], index: 1, kind: output, shape index: {0}]
  %s2 = inlined_call_operand.hbm [shape: f32[2,4,8], index: 2, kind: output, shape index: {1}]
  %3 = xla_tuple %s1, %s2
  %s4 = sld [smem:[#allocation0]]
  $region57: #{tpu_custom_call.1} parent=0
    _
  %s6 = ssub.s32 1, %s4
  %s7 = scalar_select 0, %s6, %s4
  $region1: #{tpu_custom_call.1} parent=0
    #allocation2 [shape = 'u8[65536]{0}', space=vmem, size = 0x10000, scoped, tag = 'input window, operand 0']
    #allocation3 [shape = 's32[2]{0}', space=sflag, size = 0x8, scoped, tag = 'scoped memory for tpu_custom_call.1']
    #allocation4 [shape = 's32[2]{0}', space=sflag, size = 0x8, scoped, tag = 'scoped memory for tpu_custom_call.1']
    #allocation5 [shape = 'u8[4096]{0}', space=vmem, size = 0x1000, scoped, tag = 'output window, operand 0']
    #allocation6 [shape = 'u8[4096]{0}', space=vmem, size = 0x1000, scoped, tag = 'output window, operand 1']
    #allocation7 [shape = 's32[2]{0}', space=sflag, size = 0x8, scoped, tag = 'scoped memory for tpu_custom_call.1']
    %8 = vsyncpa [#allocation3], 0
    %s9 = scalar_lea.sflag [#allocation3], 1
    %10 = vsyncpa %s9, 0
    %11 = vsyncpa [#allocation4], 0
    %s12 = scalar_lea.sflag [#allocation4], 1
    %13 = vsyncpa %s12, 0
    %14 = vsyncpa [#allocation7], 0
    %s15 = scalar_lea.sflag [#allocation7], 1
    %16 = vsyncpa %s15, 0
    loop: start=0, step=1, limit=4
    $region2: #{tpu_custom_call.1} parent=1 // loop_pre_header
      _
    $region3: #{tpu_custom_call.1} parent=1 // loop_header
      %s18 = sphi 0, %s22
      %p19 = scmp.ge.s32.totalorder %s18, 4
      %s25 = sphi 0, %s37
      %s26 = sphi 0, %s33
      %s27 = sphi 0, %s25
      %s28 = sphi 0, %s26
      %s29 = sphi 0, %s27
      %s30 = sphi 0, %s28
      %s42 = sphi 0, %s44
      %s45 = sphi 0, %s42
      %s46 = sphi 0, %s45
      %s62 = sphi 0, %s46
      %s68 = sphi 0, %s70
      %s71 = sphi 0, %s68
      %s72 = sphi 0, %s71
      %s88 = sphi 0, %s72
      %s94 = sphi 0, %s96
      %s97 = sphi 0, %s94
      %s98 = sphi 0, %s97
      %s114 = sphi 0, %s98
    $region4: #{tpu_custom_call.1} parent=1 // loop_header_branch
      %21 = sbr.rel (%p19) target = $region8
    $region5: #{tpu_custom_call.1} parent=1 // loop_body
      %s23 = ssub.s32 %s18, 1
      %s24 = ssub.s32 %s18, 2
      %s31 = sadd.s32 1, %s26
      %p32 = scmp.ge.s32.totalorder %s31, 1
      %s33 = scalar_select %p32, 0, %s31
      %s34 = sadd.s32 1, %s25
      %s35 = scalar_select %p32, %s34, %s25
      %p36 = scmp.ge.s32.totalorder %s35, 2
      %s37 = scalar_select %p36, 0, %s35
      %s38 = ssub.s32 %s25, %s37
      %s39 = ssub.s32 %s26, %s33
      %s40 = sor.u32 %s38, %s39
      %p41 = scmp.eq.s32.totalorder %s40, 0
      %s43 = sadd.s32 %s42, 1
      %s44 = scalar_select %p41, %s42, %s43
      %p47 = pneg %p41
      %p48 = scmp.eq.s32.totalorder %s18, 1
      %p49 = por %p47, %p48
      %p50 = scmp.ne.s32.totalorder %s42, %s45
      %p51 = scmp.eq.s32.totalorder %s18, 0
      %p52 = por %p50, %p51
      %p53 = scmp.ne.s32.totalorder %s42, %s45
      %p54 = scmp.eq.s32.totalorder %s23, 1
      %p55 = por %p53, %p54
      %p56 = scmp.ne.s32.totalorder %s45, %s46
      %p57 = scmp.eq.s32.totalorder %s23, 0
      %p58 = por %p56, %p57
      %p59 = scmp.ne.s32.totalorder %s45, %s46
      %p60 = scmp.eq.s32.totalorder %s24, 1
      %p61 = por %p59, %p60
      %p63 = scmp.ne.s32.totalorder %s46, %s62
      %p64 = scmp.eq.s32.totalorder %s24, 0
      %p65 = por %p63, %p64
      %s66 = ssub.s32 %s25, %s37
      %p67 = scmp.eq.s32.totalorder %s66, 0
      %s69 = sadd.s32 %s68, 1
      %s70 = scalar_select %p67, %s68, %s69
      %p73 = pneg %p67
      %p74 = scmp.eq.s32.totalorder %s18, 1
      %p75 = por %p73, %p74
      %p76 = scmp.ne.s32.totalorder %s68, %s71
      %p77 = scmp.eq.s32.totalorder %s18, 0
      %p78 = por %p76, %p77
      %p79 = scmp.ne.s32.totalorder %s68, %s71
      %p80 = scmp.eq.s32.totalorder %s23, 1
      %p81 = por %p79, %p80
      %p82 = scmp.ne.s32.totalorder %s71, %s72
      %p83 = scmp.eq.s32.totalorder %s23, 0
      %p84 = por %p82, %p83
      %p85 = scmp.ne.s32.totalorder %s71, %s72
      %p86 = scmp.eq.s32.totalorder %s24, 1
      %p87 = por %p85, %p86
      %p89 = scmp.ne.s32.totalorder %s72, %s88
      %p90 = scmp.eq.s32.totalorder %s24, 0
      %p91 = por %p89, %p90
      %s92 = ssub.s32 %s25, %s37
      %p93 = scmp.eq.s32.totalorder %s92, 0
      %s95 = sadd.s32 %s94, 1
      %s96 = scalar_select %p93, %s94, %s95
      %p99 = pneg %p93
      %p100 = scmp.eq.s32.totalorder %s18, 1
      %p101 = por %p99, %p100
      %p102 = scmp.ne.s32.totalorder %s94, %s97
      %p103 = scmp.eq.s32.totalorder %s18, 0
      %p104 = por %p102, %p103
      %p105 = scmp.ne.s32.totalorder %s94, %s97
      %p106 = scmp.eq.s32.totalorder %s23, 1
      %p107 = por %p105, %p106
      %p108 = scmp.ne.s32.totalorder %s97, %s98
      %p109 = scmp.eq.s32.totalorder %s23, 0
      %p110 = por %p108, %p109
      %p111 = scmp.ne.s32.totalorder %s97, %s98
      %p112 = scmp.eq.s32.totalorder %s24, 1
      %p113 = por %p111, %p112
      %p115 = scmp.ne.s32.totalorder %s98, %s114
      %p116 = scmp.eq.s32.totalorder %s24, 0
      %p117 = por %p115, %p116
      %p118 = scmp.le.s32.totalorder 1, %s18
      %p119 = scmp.lt.s32.totalorder %s18, 3
      %p120 = pnand %p118, %p119
      %p121 = pneg %p120
      // Predicated region
      $region9: #{tpu_custom_call.1} parent=5 // pred_check
        _
      $region10: #{tpu_custom_call.1} parent=5 // pred_check_branch
        %123 = sbr.rel (%p120) target = $region12
      $region11: #{tpu_custom_call.1} parent=5 // pred_region
        %s124 = ssub.s32 %s18, 1
      $region12: #{tpu_custom_call.1} parent=5 // pred_fallthru
        _
      %p125 = scmp.lt.s32.totalorder %s18, 2
      // Predicated region
      $region13: #{tpu_custom_call.1} parent=5 // pred_check
        %p126 = pneg %p125
      $region14: #{tpu_custom_call.1} parent=5 // pred_check_branch
        %128 = sbr.rel (%p126) target = $region16
      $region15: #{tpu_custom_call.1} parent=5 // pred_region
        // Predicated region
        $region17: #{tpu_custom_call.1} parent=15 // pred_check
          %p129 = pneg %p52
        $region18: #{tpu_custom_call.1} parent=15 // pred_check_branch
          %131 = sbr.rel (%p129) target = $region20
        $region19: #{tpu_custom_call.1} parent=15 // pred_region
          %s132 = sand.u32 %s42, 1
          %s133 = scalar_lea.sflag [#allocation3], %s132
          %s134 = sand.u32 %s42, 1
          %s135 = smul.addr %s134, 64
          %s136 = scalar_lea.vmem [#allocation2], %s135
          %s137 = smul.u32 2, %s26
          %s139 = ssub.s32 1024, 1024
          %140 = vsyncadd %s133, %s139
          %s141 = smul.addr %s25, 8
          %s142 = sadd.s32 %s137, %s141
          %s143 = smul.addr %s142, 128
          %s144 = scalar_lea.hbm %s0, %s143
          %s145 = sshll.u32 %s136, 4
          %s146 = int_to_ptr.vmem [resolvable:$true] %s145
          %151 = dma.hbm_to_vmem [thread:$0]  %s144, 1024, %s146, %s133, 256, 256, 16
        $region20: #{tpu_custom_call.1} parent=15 // pred_fallthru
          _
      $region16: #{tpu_custom_call.1} parent=5 // pred_fallthru
        _
      %p152 = scmp.le.s32.totalorder 1, %s18
      %p153 = scmp.lt.s32.totalorder %s18, 3
      %p154 = pnand %p152, %p153
      %p155 = pneg %p154
      // Predicated region
      $region21: #{tpu_custom_call.1} parent=5 // pred_check
        _
      $region22: #{tpu_custom_call.1} parent=5 // pred_check_branch
        %157 = sbr.rel (%p154) target = $region24
      $region23: #{tpu_custom_call.1} parent=5 // pred_region
        %s158 = ssub.s32 %s18, 1
        %s159 = sand.u32 %s45, 1
        %s160 = scalar_lea.sflag [#allocation3], %s159
        %s161 = sand.u32 %s45, 1
        %s162 = smul.addr %s161, 64
        %s163 = scalar_lea.vmem [#allocation2], %s162
        // Predicated region
        $region25: #{tpu_custom_call.1} parent=23 // pred_check
          %p164 = pneg %p58
        $region26: #{tpu_custom_call.1} parent=23 // pred_check_branch
          %166 = sbr.rel (%p164) target = $region28
        $region27: #{tpu_custom_call.1} parent=23 // pred_region
          %167 = dma.done %s160, 1024
        $region28: #{tpu_custom_call.1} parent=23 // pred_fallthru
          _
        %s168 = sand.u32 %s45, 1
        %s169 = scalar_lea.sflag [#allocation3], %s168
        %s170 = sand.u32 %s45, 1
        %s171 = smul.addr %s170, 64
        %s172 = scalar_lea.vmem [#allocation2], %s171
        %p173 = pneg %p58
        %p174 = pneg %p55
        %p175 = pneg %p84
        %p176 = pneg %p81
        %s177 = sand.u32 %s71, 1
        %s178 = scalar_lea.sflag [#allocation4], %s177
        %s179 = sand.u32 %s71, 1
        %s180 = smul.addr %s179, 4
        %s181 = scalar_lea.vmem [#allocation5], %s180
        %p182 = pneg %p110
        %p183 = pneg %p107
        %s184 = sand.u32 %s97, 1
        %s185 = scalar_lea.sflag [#allocation7], %s184
        %s186 = sand.u32 %s97, 1
        %s187 = smul.addr %s186, 4
        %s188 = scalar_lea.vmem [#allocation6], %s187
        %s189 = smul.u32 2, %s28
        %v190 = vld [vmem:[%s163] sm:$0xff]
        %v191 = vld [vmem:[%s163 + $0x8] sm:$0xff]
        %v192 = vld [vmem:[%s163 + $0x10] sm:$0xff]
        %v193 = vld [vmem:[%s163 + $0x18] sm:$0xff]
        %v194 = vld [vmem:[%s163 + $0x20] sm:$0xff]
        %v195 = vld [vmem:[%s163 + $0x28] sm:$0xff]
        %v196 = vld [vmem:[%s163 + $0x30] sm:$0xff]
        %v197 = vld [vmem:[%s163 + $0x38] sm:$0xff]
        %v198 = vadd.f32 %v190, %v191
        %199 = vadd.xlane.f32.xlu0 %v198
        %v200 = vpop.xlane.xlu0 %199
        %v201 = vadd.f32 %v192, %v193
        %202 = vadd.xlane.f32.xlu0 %v201
        %v203 = vpop.xlane.xlu0 %202
        %v204 = vadd.f32 %v194, %v195
        %205 = vadd.xlane.f32.xlu0 %v204
        %v206 = vpop.xlane.xlu0 %205
        %v207 = vadd.f32 %v196, %v197
        %208 = vadd.xlane.f32.xlu0 %v207
        %v209 = vpop.xlane.xlu0 %208
        %v210 = vmax.f32 %v190, %v191
        %211 = vmax.xlane.f32.xlu0 %v210
        %v212 = vpop.xlane.xlu0 %211
        %v213 = vmax.f32 %v192, %v193
        %214 = vmax.xlane.f32.xlu0 %v213
        %v215 = vpop.xlane.xlu0 %214
        %v216 = vmax.f32 %v194, %v195
        %217 = vmax.xlane.f32.xlu0 %v216
        %v218 = vpop.xlane.xlu0 %217
        %v219 = vmax.f32 %v196, %v197
        %220 = vmax.xlane.f32.xlu0 %v219
        %v221 = vpop.xlane.xlu0 %220
        %p222 = scmp.eq.s32.totalorder %s28, 0
        // Predicated region
        $region29: #{tpu_custom_call.1} parent=23 // pred_check
          %p223 = pneg %p222
        $region30: #{tpu_custom_call.1} parent=23 // pred_check_branch
          %225 = sbr.rel (%p223) target = $region32
        $region31: #{tpu_custom_call.1} parent=23 // pred_region
          %v230 = vlaneseq
          %v231 = vand.u32 %v230, 127
          %v232 = vlaneseq
          %v233 = vshrl.u32 %v232, 7
          %v234 = vsub.s32 %v231, %v233
          %v235 = vrot.slane %v200, %v234
          %v236 = vlaneseq
          %v237 = vshrl.u32 %v236, 7
          %v238 = vsub.s32 %v231, %v237
          %v239 = vrot.slane %v203, %v238
          %v240 = vlaneseq
          %v241 = vshrl.u32 %v240, 7
          %v242 = vsub.s32 %v231, %v241
          %v243 = vrot.slane %v206, %v242
          %v244 = vlaneseq
          %v245 = vshrl.u32 %v244, 7
          %v246 = vsub.s32 %v231, %v245
          %v247 = vrot.slane %v209, %v246
          %vm248 = vcmask 1041409
          %v249 = vsel %vm248, %v239, %v235
          %vm250 = vcmask 1042434
          %v251 = vsel %vm250, %v243, %v249
          %vm252 = vcmask 1043459
          %v253 = vsel %vm252, %v247, %v251
          %vm255 = vcmask 60416
          %256 = vst.msk [vmem:[%s181] sm:$0xf] %vm255, %v253
          %v261 = vlaneseq
          %v262 = vshrl.u32 %v261, 7
          %v263 = vsub.s32 %v231, %v262
          %v264 = vrot.slane %v212, %v263
          %v265 = vlaneseq
          %v266 = vshrl.u32 %v265, 7
          %v267 = vsub.s32 %v231, %v266
          %v268 = vrot.slane %v215, %v267
          %v269 = vlaneseq
          %v270 = vshrl.u32 %v269, 7
          %v271 = vsub.s32 %v231, %v270
          %v272 = vrot.slane %v218, %v271
          %v273 = vlaneseq
          %v274 = vshrl.u32 %v273, 7
          %v275 = vsub.s32 %v231, %v274
          %v276 = vrot.slane %v221, %v275
          %v277 = vsel %vm248, %v268, %v264
          %v278 = vsel %vm250, %v272, %v277
          %v279 = vsel %vm252, %v276, %v278
          %281 = vst.msk [vmem:[%s188] sm:$0xf] %vm255, %v279
        $region32: #{tpu_custom_call.1} parent=23 // pred_fallthru
          _
        %p282 = scmp.ne.s32.totalorder %s28, 0
        // Predicated region
        $region33: #{tpu_custom_call.1} parent=23 // pred_check
          %p283 = pneg %p282
        $region34: #{tpu_custom_call.1} parent=23 // pred_check_branch
          %285 = sbr.rel (%p283) target = $region36
        $region35: #{tpu_custom_call.1} parent=23 // pred_region
          %v286 = vld [vmem:[%s181] sm:$0xf]
          %v291 = vlaneseq
          %v292 = vand.u32 %v291, 127
          %v293 = vlaneseq
          %v294 = vshrl.u32 %v293, 7
          %v295 = vsub.s32 %v292, %v294
          %v296 = vrot.slane %v200, %v295
          %v297 = vlaneseq
          %v298 = vshrl.u32 %v297, 7
          %v299 = vsub.s32 %v292, %v298
          %v300 = vrot.slane %v203, %v299
          %v301 = vlaneseq
          %v302 = vshrl.u32 %v301, 7
          %v303 = vsub.s32 %v292, %v302
          %v304 = vrot.slane %v206, %v303
          %v305 = vlaneseq
          %v306 = vshrl.u32 %v305, 7
          %v307 = vsub.s32 %v292, %v306
          %v308 = vrot.slane %v209, %v307
          %vm309 = vcmask 1041409
          %v310 = vsel %vm309, %v300, %v296
          %vm311 = vcmask 1042434
          %v312 = vsel %vm311, %v304, %v310
          %vm313 = vcmask 1043459
          %v314 = vsel %vm313, %v308, %v312
          %v316 = vadd.f32 %v286, %v314
          %vm317 = vcmask 60416
          %318 = vst.msk [vmem:[%s181] sm:$0xf] %vm317, %v316
          %v319 = vld [vmem:[%s188] sm:$0xf]
          %v324 = vlaneseq
          %v325 = vshrl.u32 %v324, 7
          %v326 = vsub.s32 %v292, %v325
          %v327 = vrot.slane %v212, %v326
          %v328 = vlaneseq
          %v329 = vshrl.u32 %v328, 7
          %v330 = vsub.s32 %v292, %v329
          %v331 = vrot.slane %v215, %v330
          %v332 = vlaneseq
          %v333 = vshrl.u32 %v332, 7
          %v334 = vsub.s32 %v292, %v333
          %v335 = vrot.slane %v218, %v334
          %v336 = vlaneseq
          %v337 = vshrl.u32 %v336, 7
          %v338 = vsub.s32 %v292, %v337
          %v339 = vrot.slane %v221, %v338
          %v340 = vsel %vm309, %v331, %v327
          %v341 = vsel %vm311, %v335, %v340
          %v342 = vsel %vm313, %v339, %v341
          %v344 = vmax.f32 %v319, %v342
          %345 = vst.msk [vmem:[%s188] sm:$0xf] %vm317, %v344
        $region36: #{tpu_custom_call.1} parent=23 // pred_fallthru
          _
        %s346 = sand.u32 %s71, 1
        %s347 = scalar_lea.sflag [#allocation4], %s346
        %s348 = sand.u32 %s71, 1
        %s349 = smul.addr %s348, 4
        %s350 = scalar_lea.vmem [#allocation5], %s349
        %s351 = sand.u32 %s97, 1
        %s352 = scalar_lea.sflag [#allocation7], %s351
        %s353 = sand.u32 %s97, 1
        %s354 = smul.addr %s353, 4
        %s355 = scalar_lea.vmem [#allocation6], %s354
        // Predicated region
        $region37: #{tpu_custom_call.1} parent=23 // pred_check
          %p356 = pneg %p81
        $region38: #{tpu_custom_call.1} parent=23 // pred_check_branch
          %358 = sbr.rel (%p356) target = $region40
        $region39: #{tpu_custom_call.1} parent=23 // pred_region
          %s360 = ssub.s32 64, 64
          %361 = vsyncadd %s347, %s360
          %s362 = smul.addr %s27, 64
          %s363 = scalar_lea.hbm %s1, %s362
          %s365 = sshll.u32 %s350, 4
          %s366 = int_to_ptr.vmem [resolvable:$true] %s365
          %368 = dma.vmem_to_hbm [thread:$0]  %s366, 64, %s363, %s347
        $region40: #{tpu_custom_call.1} parent=23 // pred_fallthru
          _
        // Predicated region
        $region41: #{tpu_custom_call.1} parent=23 // pred_check
          %p369 = pneg %p107
        $region42: #{tpu_custom_call.1} parent=23 // pred_check_branch
          %371 = sbr.rel (%p369) target = $region44
        $region43: #{tpu_custom_call.1} parent=23 // pred_region
          %s373 = ssub.s32 64, 64
          %374 = vsyncadd %s352, %s373
          %s375 = smul.addr %s27, 64
          %s376 = scalar_lea.hbm %s2, %s375
          %s378 = sshll.u32 %s355, 4
          %s379 = int_to_ptr.vmem [resolvable:$true] %s378
          %381 = dma.vmem_to_hbm [thread:$0]  %s379, 64, %s376, %s352
        $region44: #{tpu_custom_call.1} parent=23 // pred_fallthru
          _
      $region24: #{tpu_custom_call.1} parent=5 // pred_fallthru
        _
      %p382 = scmp.le.s32.totalorder 2, %s18
      // Predicated region
      $region45: #{tpu_custom_call.1} parent=5 // pred_check
        %p383 = pneg %p382
      $region46: #{tpu_custom_call.1} parent=5 // pred_check_branch
        %385 = sbr.rel (%p383) target = $region48
      $region47: #{tpu_custom_call.1} parent=5 // pred_region
        %s386 = ssub.s32 %s18, 2
        // Predicated region
        $region49: #{tpu_custom_call.1} parent=47 // pred_check
          %p387 = pneg %p87
        $region50: #{tpu_custom_call.1} parent=47 // pred_check_branch
          %389 = sbr.rel (%p387) target = $region52
        $region51: #{tpu_custom_call.1} parent=47 // pred_region
          %s390 = sand.u32 %s72, 1
          %s391 = scalar_lea.sflag [#allocation4], %s390
          %s392 = sand.u32 %s72, 1
          %s393 = smul.addr %s392, 4
          %s394 = scalar_lea.vmem [#allocation5], %s393
          %395 = dma.done %s391, 64
        $region52: #{tpu_custom_call.1} parent=47 // pred_fallthru
          _
        // Predicated region
        $region53: #{tpu_custom_call.1} parent=47 // pred_check
          %p396 = pneg %p113
        $region54: #{tpu_custom_call.1} parent=47 // pred_check_branch
          %398 = sbr.rel (%p396) target = $region56
        $region55: #{tpu_custom_call.1} parent=47 // pred_region
          %s399 = sand.u32 %s98, 1
          %s400 = scalar_lea.sflag [#allocation7], %s399
          %s401 = sand.u32 %s98, 1
          %s402 = smul.addr %s401, 4
          %s403 = scalar_lea.vmem [#allocation6], %s402
          %404 = dma.done %s400, 64
        $region56: #{tpu_custom_call.1} parent=47 // pred_fallthru
          _
      $region48: #{tpu_custom_call.1} parent=5 // pred_fallthru
        _
    $region6: #{tpu_custom_call.1} parent=1 // loop_footer
      %s22 = sadd.s32 1, %s18
    $region7: #{tpu_custom_call.1} parent=1 // loop_footer_branch
      %17 = sbr.rel target = $region3
    $region8: #{tpu_custom_call.1} parent=1 // loop_exit
      _
    %405 = vsyncpa [#allocation3], 1
    %s406 = scalar_lea.sflag [#allocation3], 1
    %407 = vsyncpa %s406, 1
    %408 = vsyncpa [#allocation4], 1
    %s409 = scalar_lea.sflag [#allocation4], 1
    %410 = vsyncpa %s409, 1
    %411 = vsyncpa [#allocation7], 1
    %s412 = scalar_lea.sflag [#allocation7], 1
    %413 = vsyncpa %s412, 1

</llo_original>
